<compile_context>
chip_gen: v5e
topology: v5e:2x2
jax: 0.10.0
libtpu: 0.0.40
codegen_flags: <defaults>
</compile_context>

<pallas_src>
import functools
import math

import jax
import jax.numpy as jnp
from jax.experimental import pallas as pl
from jax.experimental.pallas import tpu as pltpu

_NEG_LOG_1E4 = -math.log(1e-4)  # = 9.2103403719761836


def _sce_tile_kernel(pred_ref, labels_ref, out_ref, *, batch, tile_rows):
    """One batch tile: (TB, C) logits + (TB, 1) int32 labels -> (1, 8, 128) partials."""
    step = pl.program_id(0)

    pred = pred_ref[...].astype(jnp.float32)        # (TB, C) upcast happens in VMEM only
    labels = labels_ref[...]                        # (TB, 1) int32
    tb, c = pred.shape

    # Tail mask for the (possibly) ragged last tile: rows >= batch contribute 0.
    row_ids = step * tile_rows + jax.lax.broadcasted_iota(jnp.int32, (tb, 1), 0)
    valid = row_ids < batch                         # (TB, 1) bool
    pred = jnp.where(valid, pred, 0.0)              # sanitize OOB rows -> finite math

    # one_hot(labels, C) built in-kernel via iota compare (no XLA one_hot / gather).
    class_ids = jax.lax.broadcasted_iota(jnp.int32, (tb, c), 1)
    onehot = class_ids == labels                    # (TB, C) bool

    # Numerically stable softmax / log-softmax; exp computed exactly once (EUP).
    m = jnp.max(pred, axis=1, keepdims=True)
    shifted = pred - m
    es = jnp.exp(shifted)                           # (TB, C), single transcendental pass
    denom = jnp.sum(es, axis=1, keepdims=True)      # (TB, 1)
    log_denom = jnp.log(denom)                      # (TB, 1)

    # CE rows: -(log_softmax at label) = log_denom - shifted[label].
    shifted_at_label = jnp.sum(jnp.where(onehot, shifted, 0.0), axis=1, keepdims=True)
    ce_rows = log_denom - shifted_at_label          # (TB, 1)

    # RCE rows, folded: p = clamp(softmax, 1e-7, 1);
    #   rce = -sum(p * log(clamp(one_hot, 1e-4, 1))) = -log(1e-4) * (sum(p) - p[label]).
    p = jnp.clip(es * (1.0 / denom), 1e-7, 1.0)     # (TB, C)  (TB cheap exact reciprocals)
    p_sum = jnp.sum(p, axis=1, keepdims=True)
    p_at_label = jnp.sum(jnp.where(onehot, p, 0.0), axis=1, keepdims=True)
    rce_rows = _NEG_LOG_1E4 * (p_sum - p_at_label)  # (TB, 1)

    valid_f = valid.astype(jnp.float32)
    ce_part = jnp.sum(ce_rows * valid_f)            # scalar: tile CE sum
    rce_part = jnp.sum(rce_rows * valid_f)          # scalar: tile RCE sum

    # Lane-dense (1, 8, 128) partial block: sublane 0 carries CE, sublane 1 RCE.
    sub = jax.lax.broadcasted_iota(jnp.int32, (1, 8, 128), 1)
    out_ref[...] = jnp.where(sub == 0, ce_part, jnp.where(sub == 1, rce_part, 0.0))


def _pick_batch_tile(batch, num_classes, dtype_bytes, max_rows_per_tile):
    """Largest row tile (multiple of 8) whose resident VMEM footprint fits a budget
    safe on every generation (v5e 16 MiB scoped default, v7x 64 MiB physical)."""
    if batch <= 8:
        return batch                                 # full-dim block is always legal
    budget = 12 << 20                                # conservative resident-bytes target
    # per row: double-buffered input (2 * dtype_bytes) + ~4 f32 temporaries (16B) per
    # class element, plus the double-buffered int32 label.
    per_row = num_classes * (2 * dtype_bytes + 16) + 8
    tb = min(max_rows_per_tile, max(8, budget // per_row))
    tb = max(8, (tb // 8) * 8)                       # sublane-aligned
    if tb >= batch:
        return batch                                 # single full block (always legal)
    # TODO(synk): for vocab-scale num_classes (tens of thousands) add a class-axis
    # grid dimension with streaming (flash-style) logsumexp instead of shrinking TB.
    return tb


def sce_loss(pred, labels, *, alpha=1.0, beta=0.1, max_rows_per_tile=1024):
    """loss = alpha * CE(pred, labels) + beta * mean(RCE); matches SCELoss.forward(mod='sce')."""
    b, c = pred.shape
    labels2d = labels.astype(jnp.int32).reshape(b, 1)
    dtype_bytes = jnp.dtype(pred.dtype).itemsize

    tb = _pick_batch_tile(b, c, dtype_bytes, max_rows_per_tile)
    num_tiles = (b + tb - 1) // tb                   # ceil-div grid; tail masked in-kernel

    kern = functools.partial(_sce_tile_kernel, batch=b, tile_rows=tb)
    partials = pl.pallas_call(
        kern,
        out_shape=jax.ShapeDtypeStruct((num_tiles, 8, 128), jnp.float32),
        grid=(num_tiles,),
        in_specs=[
            pl.BlockSpec((tb, c), lambda i: (i, 0)),   # logits stay in caller dtype in HBM
            pl.BlockSpec((tb, 1), lambda i: (i, 0)),
        ],
        out_specs=pl.BlockSpec((1, 8, 128), lambda i: (i, 0, 0)),
        compiler_params=pltpu.CompilerParams(
            dimension_semantics=("parallel",),         # no carried state -> megacore OK
            vmem_limit_bytes=32 * 1024 * 1024,
        ),
        cost_estimate=pl.CostEstimate(
            flops=10 * b * c,
            transcendentals=b * c + 2 * b,
            bytes_accessed=b * c * dtype_bytes + 4 * b + num_tiles * 8 * 128 * 4,
        ),
    )(pred, labels2d)

    # Tiny XLA-side combine of the per-tile partial sums.
    ce = jnp.sum(partials[:, 0, 0]) / b
    rce_mean = jnp.sum(partials[:, 1, 0]) / b
    return alpha * ce + beta * rce_mean


def _sce_loss_ref(pred, labels, *, alpha=1.0, beta=0.1, num_classes=10):
    # Pure-JAX reference for the correctness check.
    pred = pred.astype(jnp.float32)
    log_sm = jax.nn.log_softmax(pred, axis=1)
    ce = -jnp.mean(jnp.take_along_axis(log_sm, labels[:, None], axis=1))
    p = jnp.clip(jax.nn.softmax(pred, axis=1), 1e-7, 1.0)
    oh = jnp.clip(jax.nn.one_hot(labels, num_classes, dtype=jnp.float32), 1e-4, 1.0)
    rce = -jnp.sum(p * jnp.log(oh), axis=1)
    return alpha * ce + beta * jnp.mean(rce)


if __name__ == "__main__":
    # TODO(synk): the reference forward returns nothing for mod != 'sce'; only the
    # default 'sce' path is implemented here.
    ALPHA, BETA = 1.0, 0.1
    NUM_CLASSES = 10

    key = jax.random.PRNGKey(0)
    k1, k2, k3, k4 = jax.random.split(key, 4)

    # Case 1: module-default-sized small batch, single block.
    B = 8
    pred = jax.random.normal(k1, (B, NUM_CLASSES), jnp.float32)
    labels = jax.random.randint(k2, (B,), 0, NUM_CLASSES, jnp.int32)
    loss = sce_loss(pred, labels, alpha=ALPHA, beta=BETA)
    jax.block_until_ready(loss)
    ref = _sce_loss_ref(pred, labels, alpha=ALPHA, beta=BETA, num_classes=NUM_CLASSES)
    assert bool(jnp.isfinite(loss)), "loss is not finite"
    assert abs(float(loss) - float(ref)) < 1e-4, (float(loss), float(ref))

    # Case 2: ragged batch exercising the ceil-div grid + in-kernel tail mask.
    B2 = 20
    pred2 = jax.random.normal(k3, (B2, NUM_CLASSES), jnp.float32)
    labels2 = jax.random.randint(k4, (B2,), 0, NUM_CLASSES, jnp.int32)
    loss2 = sce_loss(pred2, labels2, alpha=ALPHA, beta=BETA, max_rows_per_tile=8)
    jax.block_until_ready(loss2)
    ref2 = _sce_loss_ref(pred2, labels2, alpha=ALPHA, beta=BETA, num_classes=NUM_CLASSES)
    assert abs(float(loss2) - float(ref2)) < 1e-4, (float(loss2), float(ref2))

    print("KERNEL_OK")
</pallas_src>

<mosaic_0001>
module attributes {stable_mosaic.version = 11 : i64} {
  func.func @_sce_tile_kernel(%arg0: i32, %arg1: memref<8x10xf32, #tpu.memory_space<vmem>>, %arg2: memref<8x1xi32, #tpu.memory_space<vmem>>, %arg3: memref<1x8x128xf32, #tpu.memory_space<vmem>>) attributes {dimension_semantics = [#tpu.dimension_semantics<parallel>], iteration_bounds = array<i64: 1>, scalar_prefetch = 0 : i64, scratch_operands = 0 : i64, tpu.core_type = #tpu.core_type<tc>, window_params = [{transform_indices = @transform_0, window_bounds = array<i64: 8, 10>}, {transform_indices = @transform_1, window_bounds = array<i64: 8, 1>}, {transform_indices = @transform_2, window_bounds = array<i64: 1, 8, 128>}]} {
    %c0 = arith.constant 0 : index
    %c0_0 = arith.constant 0 : index
    %0 = vector.load %arg1[%c0, %c0_0] : memref<8x10xf32, #tpu.memory_space<vmem>>, vector<8x10xf32>
    %c0_1 = arith.constant 0 : index
    %c0_2 = arith.constant 0 : index
    %1 = vector.load %arg2[%c0_1, %c0_2] : memref<8x1xi32, #tpu.memory_space<vmem>>, vector<8x1xi32>
    %c8_i32 = arith.constant 8 : i32
    %2 = arith.muli %arg0, %c8_i32 : i32
    %3 = tpu.iota {dimensions = array<i32: 0>} : vector<8x1xi32>
    %4 = vector.broadcast %2 : i32 to vector<8x1xi32>
    %5 = arith.addi %4, %3 : vector<8x1xi32>
    %c8_i32_3 = arith.constant 8 : i32
    %6 = vector.broadcast %c8_i32_3 : i32 to vector<8x1xi32>
    %7 = arith.cmpi slt, %5, %6 : vector<8x1xi32>
    %cst = arith.constant 0.000000e+00 : f32
    %8 = vector.shape_cast %7 : vector<8x1xi1> to vector<8x1xi1>
    %9 = vector.broadcast %8 : vector<8x1xi1> to vector<8x10xi1>
    %10 = vector.broadcast %cst : f32 to vector<8x10xf32>
    %11 = arith.select %9, %0, %10 : vector<8x10xi1>, vector<8x10xf32>
    %12 = tpu.iota {dimensions = array<i32: 1>} : vector<8x10xi32>
    %13 = vector.broadcast %1 : vector<8x1xi32> to vector<8x10xi32>
    %14 = arith.cmpi eq, %12, %13 : vector<8x10xi32>
    %cst_4 = arith.constant dense<0xFF800000> : vector<8xf32>
    %15 = vector.multi_reduction <maximumf>, %11, %cst_4 [1] : vector<8x10xf32> to vector<8xf32>
    %16 = vector.shape_cast %15 : vector<8xf32> to vector<8x1xf32>
    %17 = vector.broadcast %16 : vector<8x1xf32> to vector<8x10xf32>
    %18 = arith.subf %11, %17 : vector<8x10xf32>
    %19 = math.exp %18 : vector<8x10xf32>
    %cst_5 = arith.constant dense<0.000000e+00> : vector<8xf32>
    %20 = vector.multi_reduction <add>, %19, %cst_5 [1] : vector<8x10xf32> to vector<8xf32>
    %21 = vector.shape_cast %20 : vector<8xf32> to vector<8x1xf32>
    %22 = math.log %21 : vector<8x1xf32>
    %cst_6 = arith.constant 0.000000e+00 : f32
    %23 = vector.broadcast %cst_6 : f32 to vector<8x10xf32>
    %24 = arith.select %14, %18, %23 : vector<8x10xi1>, vector<8x10xf32>
    %cst_7 = arith.constant dense<0.000000e+00> : vector<8xf32>
    %25 = vector.multi_reduction <add>, %24, %cst_7 [1] : vector<8x10xf32> to vector<8xf32>
    %26 = vector.shape_cast %25 : vector<8xf32> to vector<8x1xf32>
    %27 = arith.subf %22, %26 : vector<8x1xf32>
    %cst_8 = arith.constant 1.000000e+00 : f32
    %28 = vector.broadcast %cst_8 : f32 to vector<8x1xf32>
    %29 = arith.divf %28, %21 : vector<8x1xf32>
    %30 = vector.broadcast %29 : vector<8x1xf32> to vector<8x10xf32>
    %31 = arith.mulf %19, %30 : vector<8x10xf32>
    %cst_9 = arith.constant 1.000000e-07 : f32
    %cst_10 = arith.constant 1.000000e+00 : f32
    %32 = vector.broadcast %cst_9 : f32 to vector<8x10xf32>
    %33 = arith.maximumf %32, %31 : vector<8x10xf32>
    %34 = vector.broadcast %cst_10 : f32 to vector<8x10xf32>
    %35 = arith.minimumf %34, %33 : vector<8x10xf32>
    %cst_11 = arith.constant dense<0.000000e+00> : vector<8xf32>
    %36 = vector.multi_reduction <add>, %35, %cst_11 [1] : vector<8x10xf32> to vector<8xf32>
    %37 = vector.shape_cast %36 : vector<8xf32> to vector<8x1xf32>
    %cst_12 = arith.constant 0.000000e+00 : f32
    %38 = vector.broadcast %cst_12 : f32 to vector<8x10xf32>
    %39 = arith.select %14, %35, %38 : vector<8x10xi1>, vector<8x10xf32>
    %cst_13 = arith.constant dense<0.000000e+00> : vector<8xf32>
    %40 = vector.multi_reduction <add>, %39, %cst_13 [1] : vector<8x10xf32> to vector<8xf32>
    %41 = vector.shape_cast %40 : vector<8xf32> to vector<8x1xf32>
    %42 = arith.subf %37, %41 : vector<8x1xf32>
    %cst_14 = arith.constant 9.21034049 : f32
    %43 = vector.broadcast %cst_14 : f32 to vector<8x1xf32>
    %44 = arith.mulf %43, %42 : vector<8x1xf32>
    %45 = arith.extui %7 : vector<8x1xi1> to vector<8x1xi32>
    %46 = arith.sitofp %45 : vector<8x1xi32> to vector<8x1xf32>
    %47 = arith.mulf %27, %46 : vector<8x1xf32>
    %48 = vector.shape_cast %47 : vector<8x1xf32> to vector<1x8x1xf32>
    %cst_15 = arith.constant dense<0.000000e+00> : vector<1xf32>
    %49 = vector.multi_reduction <add>, %48, %cst_15 [1, 2] : vector<1x8x1xf32> to vector<1xf32>
    %50 = vector.shape_cast %49 : vector<1xf32> to vector<1x1x1xf32>
    %51 = vector.extract %50[0, 0, 0] : f32 from vector<1x1x1xf32>
    %52 = arith.mulf %44, %46 : vector<8x1xf32>
    %53 = vector.shape_cast %52 : vector<8x1xf32> to vector<1x8x1xf32>
    %cst_16 = arith.constant dense<0.000000e+00> : vector<1xf32>
    %54 = vector.multi_reduction <add>, %53, %cst_16 [1, 2] : vector<1x8x1xf32> to vector<1xf32>
    %55 = vector.shape_cast %54 : vector<1xf32> to vector<1x1x1xf32>
    %56 = vector.extract %55[0, 0, 0] : f32 from vector<1x1x1xf32>
    %57 = tpu.iota {dimensions = array<i32: 1>} : vector<1x8x128xi32>
    %c0_i32 = arith.constant 0 : i32
    %58 = vector.broadcast %c0_i32 : i32 to vector<1x8x128xi32>
    %59 = arith.cmpi eq, %57, %58 : vector<1x8x128xi32>
    %c1_i32 = arith.constant 1 : i32
    %60 = vector.broadcast %c1_i32 : i32 to vector<1x8x128xi32>
    %61 = arith.cmpi eq, %57, %60 : vector<1x8x128xi32>
    %cst_17 = arith.constant 0.000000e+00 : f32
    %62 = vector.broadcast %56 : f32 to vector<1x8x128xf32>
    %63 = vector.broadcast %cst_17 : f32 to vector<1x8x128xf32>
    %64 = arith.select %61, %62, %63 : vector<1x8x128xi1>, vector<1x8x128xf32>
    %65 = vector.broadcast %51 : f32 to vector<1x8x128xf32>
    %66 = arith.select %59, %65, %64 : vector<1x8x128xi1>, vector<1x8x128xf32>
    %c0_18 = arith.constant 0 : index
    %c0_19 = arith.constant 0 : index
    %c0_20 = arith.constant 0 : index
    %67 = vector.load %arg3[%c0_18, %c0_19, %c0_20] : memref<1x8x128xf32, #tpu.memory_space<vmem>>, vector<1x8x128xf32>
    tpu.vector_store %arg3[%c0_18, %c0_19, %c0_20], %66 {strides = array<i32>} : memref<1x8x128xf32, #tpu.memory_space<vmem>>, vector<1x8x128xf32>,
    return
  }
  func.func @transform_0(%arg0: i32) -> (i32, i32) {
    %c0_i32 = arith.constant 0 : i32
    %c0_i32_0 = arith.constant 0 : i32
    return %arg0, %c0_i32 : i32, i32
  }
  func.func @transform_1(%arg0: i32) -> (i32, i32) {
    %c0_i32 = arith.constant 0 : i32
    %c0_i32_0 = arith.constant 0 : i32
    return %arg0, %c0_i32 : i32, i32
  }
  func.func @transform_2(%arg0: i32) -> (i32, i32, i32) {
    %c0_i32 = arith.constant 0 : i32
    %c0_i32_0 = arith.constant 0 : i32
    %c0_i32_1 = arith.constant 0 : i32
    return %arg0, %c0_i32, %c0_i32_0 : i32, i32, i32
  }
}

</mosaic_0001>

<llo_original>
// kernel: tpu_custom_call.1
$region0: #{tpu_custom_call.1}
  #allocation0 [shape = 'u32[]', space=smem, size = 0x4, offset = 0x4, fixed_abs, tag = 'smem constant byte address 0x4 - core index']
  #allocation1 [shape = 'u32[72,128]{1,0:T(1,128)}', space=vmem, size = 0x9000, scoped, tag = 'internal scratch']
  %s0 = inlined_call_operand.vmem [shape: f32[8,10], index: 0, kind: input, shape index: {}]
  %s1 = inlined_call_operand.vmem [shape: s32[8,1], index: 1, kind: input, shape index: {}]
  %s2 = inlined_call_operand.hbm [shape: f32[1,8,128], index: 2, kind: output, shape index: {}]
  %s3 = sld [smem:[#allocation0]]
  $region18: #{tpu_custom_call.1} parent=0
    _
  %s5 = ssub.s32 1, %s3
  %s6 = scalar_select 0, %s5, %s3
  $region1: #{tpu_custom_call.1} parent=0
    #allocation2 [shape = 'u8[4096]{0}', space=vmem, size = 0x1000, scoped, tag = 'output window, operand 0, single buffered']
    #allocation3 [shape = 's32[1]{0}', space=sflag, size = 0x4, scoped, tag = 'scoped memory for tpu_custom_call.1']
    %7 = vsyncpa [#allocation3], 0
    // Predicated region
    $region2: #{tpu_custom_call.1} parent=1 // pred_check
      _
    $region3: #{tpu_custom_call.1} parent=1 // pred_check_branch
      %9 = sbr.rel (0) target = $region5
    $region4: #{tpu_custom_call.1} parent=1 // pred_region
      _
    $region5: #{tpu_custom_call.1} parent=1 // pred_fallthru
      _
    // Predicated region
    $region6: #{tpu_custom_call.1} parent=1 // pred_check
      _
    $region7: #{tpu_custom_call.1} parent=1 // pred_check_branch
      %11 = sbr.rel (0) target = $region9
    $region8: #{tpu_custom_call.1} parent=1 // pred_region
      _
    $region9: #{tpu_custom_call.1} parent=1 // pred_fallthru
      _
    %v12 = vld [vmem:[%s0] sm:$0xff]
    %v13 = vld [vmem:[%s1] sm:$0xff]
    %s14 = smul.u32 0, 8
    %v15 = vlaneseq
    %v16 = vshrl.u32 %v15, 7
    %v17 = vstv %s14
    %v18 = vadd.s32 %v17, %v16
    %vm19 = vcmp.lt.s32.totalorder %v18, 8
    %v20 = vsel %vm19, 1, 0
    %vm21 = vcmp.eq.s32.totalorder %v20, 1
    %v22 = vsel %vm21, %v12, 0.0
    %v23 = vlaneseq
    %v24 = vand.u32 %v23, 127
    %25 = vset.pattern.permute.xlu0 0
    %26 = vperm.xlu0 %25, %v13
    %v27 = vpop.permute.xlu0 %26
    %vm28 = vcmp.eq.s32.totalorder %v24, %v27
    %vm29 = vcmask 80896
    %v30 = vsel %vm29, %v22, -inf
    %31 = vmax.xlane.f32.xlu0 %v30
    %v32 = vpop.xlane.xlu0 %31
    %v33 = vsub.f32 %v22, %v32
    %v34 = vmul.f32 %v33, 1.442695
    %v35 = vpow.pop %v34
    %v36 = vsel %vm29, %v35, 0.0
    %37 = vadd.xlane.f32.xlu0 %v36
    %v38 = vpop.xlane.xlu0 %37
    %v39 = vlog2.pop %v38
    %v40 = vmul.f32 %v39, 0.6931472
    %v41 = vsel %vm28, %v33, 0.0
    %v42 = vsel %vm29, %v41, 0.0
    %43 = vadd.xlane.f32.xlu0 %v42
    %v44 = vpop.xlane.xlu0 %43
    %v45 = vsub.f32 %v40, %v44
    %v46 = vrcp.pop %v38
    %v47 = vmul.f32 %v38, %v46
    %v48 = vsub.f32 1.0, %v47
    %v49 = vmul.f32 %v46, %v48
    %v50 = vadd.f32 %v46, %v49
    %vm51 = vweird.f32 %v38
    %vm52 = vweird.f32 %v46
    %vm53 = vmor %vm51, %vm52
    %v54 = vsel %vm53, %v46, %v50
    %v55 = vand.u32 2147483647, %v38
    %vm56 = vcmp.eq.f32.partialorder %v55, 8.507059e+37
    %v57 = vand.u32 %v38, 2147483648
    %v58 = vor.u32 1.1754944e-38, %v57
    %v59 = vsel %vm56, %v58, %v54
    %v60 = vmul.f32 1.0, %v59
    %v61 = vmul.f32 %v35, %v60
    %v62 = vmax.f32 %v61, 1e-07
    %v63 = vmin.f32 %v62, 1.0
    %v64 = vsel %vm29, %v63, 0.0
    %65 = vadd.xlane.f32.xlu0 %v64
    %v66 = vpop.xlane.xlu0 %65
    %v67 = vsel %vm28, %v63, 0.0
    %v68 = vsel %vm29, %v67, 0.0
    %69 = vadd.xlane.f32.xlu0 %v68
    %v70 = vpop.xlane.xlu0 %69
    %v71 = vsub.f32 %v66, %v70
    %v72 = vmul.f32 %v71, 9.2103405
    %v73 = vcvt.s32.f32 %v20
    %v74 = vmul.f32 %v45, %v73
    %vm75 = vcmask 7168
    %v76 = vsel %vm75, %v74, 0.0
    %77 = vadd.xlane.f32.xlu0 %v76
    %v78 = vpop.xlane.xlu0 %77
    %v79 = vrot.slane %v78, 4
    %v80 = vadd.f32 %v78, %v79
    %v81 = vrot.slane %v80, 2
    %v82 = vadd.f32 %v80, %v81
    %v83 = vrot.slane %v82, 1
    %v84 = vadd.f32 %v82, %v83
    %s85 = vtos %v84
    %v86 = vmul.f32 %v72, %v73
    %v87 = vsel %vm75, %v86, 0.0
    %88 = vadd.xlane.f32.xlu0 %v87
    %v89 = vpop.xlane.xlu0 %88
    %v90 = vrot.slane %v89, 4
    %v91 = vadd.f32 %v89, %v90
    %v92 = vrot.slane %v91, 2
    %v93 = vadd.f32 %v91, %v92
    %v94 = vrot.slane %v93, 1
    %v95 = vadd.f32 %v93, %v94
    %s96 = vtos %v95
    %vm97 = vcmp.eq.s32.totalorder %v16, 0
    %vm98 = vcmp.eq.s32.totalorder %v16, 1
    %v99 = vstv %s96
    %v100 = vsel %vm98, %v99, 0.0
    %v101 = vstv %s85
    %v102 = vsel %vm97, %v101, %v100
    %103 = vst [vmem:[#allocation2] sm:$0xff] %v102
    // Predicated region
    $region10: #{tpu_custom_call.1} parent=1 // pred_check
      _
    $region11: #{tpu_custom_call.1} parent=1 // pred_check_branch
      %105 = sbr.rel (0) target = $region13
    $region12: #{tpu_custom_call.1} parent=1 // pred_region
      %107 = vsyncadd [#allocation3], 0
      %s109 = sshll.u32 [#allocation2], 4
      %s110 = int_to_ptr.vmem [resolvable:$true] %s109
      %s111 = sshll.u32 %s2, 4
      %s112 = int_to_ptr.hbm [resolvable:$true] %s111
      %114 = dma.vmem_to_hbm [thread:$0]  %s110, 128, %s112, [#allocation3]
    $region13: #{tpu_custom_call.1} parent=1 // pred_fallthru
      _
    // Predicated region
    $region14: #{tpu_custom_call.1} parent=1 // pred_check
      _
    $region15: #{tpu_custom_call.1} parent=1 // pred_check_branch
      %116 = sbr.rel (0) target = $region17
    $region16: #{tpu_custom_call.1} parent=1 // pred_region
      %118 = dma.done [#allocation3], 128
    $region17: #{tpu_custom_call.1} parent=1 // pred_fallthru
      _
    %119 = vsyncpa [#allocation3], 1

</llo_original>
